<compile_context>
chip_gen: v5e
topology: v5e:2x2
jax: 0.10.0
libtpu: 0.0.40
codegen_flags: <defaults>
</compile_context>

<pallas_src>
import math

import jax
import jax.numpy as jnp
from jax import lax
from jax.experimental import pallas as pl
from jax.experimental.pallas import tpu as pltpu

_LANES = 128
_CHUNK_TARGET_ROWS = 256   # ~128 KiB f32 per in-kernel store chunk
_ROW_CAP = 8192            # ~4 MiB f32 per output block (8 MiB double-buffered)


def _std_kernel(pat_ref, std_ref):
    """Replicate the precomputed std pattern chunk across the output block.

    pat_ref: (chunk, 128) exp(bias) pattern.  Its block index is constant across
             the grid, so it is DMA'd into VMEM once and stays resident.
    std_ref: (tb, 128) output block; tb is a static multiple of chunk, so the
             body is just `reps` full-lane, sublane-aligned stores of one small
             VMEM-resident value (no EUP, no XLU, no broadcast temp).
    """
    pat = pat_ref[...]
    chunk = pat_ref.shape[0]
    reps = std_ref.shape[0] // chunk
    if reps == 1:
        std_ref[...] = pat
    else:
        align = chunk & -chunk  # largest power-of-two divisor of chunk (>= 8 here)

        def body(r, carry):
            start = pl.multiple_of(r * chunk, align)
            std_ref[pl.ds(start, chunk), :] = pat
            return carry

        lax.fori_loop(0, reps, body, 0, unroll=True)


def diag_gaussian_forward(x, logstd_bias):
    """Returns (mean, std) of FixedNormal(x, exp(logstd_bias)) for 2-D x.

    x:           (B, A) float array
    logstd_bias: (A,)   float array (the AddBias parameter)
    """
    B, A = x.shape

    # mean = x (identity): returned directly, no kernel traffic.
    mean = x

    total = B * A
    out_rows = pl.cdiv(total, _LANES)            # lane-dense view rows (tail padded)
    p_rows = A // math.gcd(A, _LANES)            # bias pattern period, in 128-wide rows
    unit = (p_rows * 8) // math.gcd(p_rows, 8)   # lcm(p_rows, 8): pattern- & sublane-aligned quantum

    if out_rows <= unit:
        # Tiny problem: single full-extent block (block_shape == array shape is legal
        # even when not a multiple of 8); pattern covers the whole output.
        chunk = tb = out_rows
    else:
        avail = (out_rows // unit) * unit                       # largest aligned tile <= out_rows
        chunk = min(avail, unit * pl.cdiv(_CHUNK_TARGET_ROWS, unit))
        tb_cap = chunk * max(1, _ROW_CAP // chunk)              # ~8192 rows, multiple of chunk
        # Aim for >= 2 roughly balanced grid steps when there is enough work
        # (v7x dual-TC sharding + output-writeback pipelining); never exceed out_rows.
        half = chunk * pl.cdiv(pl.cdiv(out_rows, 2), chunk)
        tb = max(chunk, min(tb_cap, half))

    grid = (pl.cdiv(out_rows, tb),)

    # std pattern: exp(bias) laid out exactly as the first `chunk` lane-dense rows.
    # This fuses exp + tile + reshape into one tiny XLA op (<= ~0.5 MiB), removing
    # all per-grid-step transcendental work from the kernel.
    std_vals = jnp.exp(logstd_bias.astype(jnp.float32))
    n_rep = pl.cdiv(chunk * _LANES, A)
    pattern = jnp.tile(std_vals, n_rep)[: chunk * _LANES]
    pattern = pattern.reshape(chunk, _LANES).astype(x.dtype)

    itemsize = jnp.dtype(x.dtype).itemsize
    std_flat = pl.pallas_call(
        _std_kernel,
        out_shape=jax.ShapeDtypeStruct((out_rows, _LANES), x.dtype),
        grid=grid,
        in_specs=[
            # Constant block index -> fetched once, stays VMEM-resident.
            pl.BlockSpec((chunk, _LANES), lambda i: (0, 0)),
        ],
        out_specs=pl.BlockSpec((tb, _LANES), lambda i: (i, 0)),
        compiler_params=pltpu.CompilerParams(
            dimension_semantics=("parallel",),
        ),
        cost_estimate=pl.CostEstimate(
            flops=0,
            transcendentals=0,
            bytes_accessed=(out_rows + chunk) * _LANES * itemsize,
        ),
    )(pattern)

    if out_rows * _LANES == total:
        std = std_flat.reshape(B, A)           # contiguous: free reshape
    else:
        # Padded tail (B*A not a multiple of 128): slice back; one small extra copy.
        std = std_flat.reshape(-1)[:total].reshape(B, A)
    return mean, std


def _reference(x, logstd_bias):
    B, A = x.shape
    return x, jnp.broadcast_to(jnp.exp(logstd_bias)[None, :], (B, A))


if __name__ == "__main__":
    # Deterministic synthetic setup: config.action_size = 32, batch = 8.
    B, A = 8, 32
    key = jax.random.PRNGKey(0)
    x = jax.random.normal(key, (B, A), dtype=jnp.float32)

    # AddBias parameter (zeros at init), perturbed so exp(bias) != 1 everywhere.
    logstd_bias = 0.1 * jax.random.normal(jax.random.PRNGKey(1), (A,), dtype=jnp.float32)

    mean, std = diag_gaussian_forward(x, logstd_bias)
    jax.block_until_ready((mean, std))

    ref_mean, ref_std = _reference(x, logstd_bias)
    assert jnp.allclose(mean, ref_mean, atol=1e-6)
    assert jnp.allclose(std, ref_std, atol=1e-6)

    # Exercise the general tiling paths as well (multi-block + in-kernel loop,
    # and an action size that does not divide 128 with a ragged last block).
    for (b2, a2) in ((4096, 32), (1000, 48)):
        x2 = jax.random.normal(jax.random.PRNGKey(2), (b2, a2), dtype=jnp.float32)
        bias2 = 0.05 * jax.random.normal(jax.random.PRNGKey(3), (a2,), dtype=jnp.float32)
        m2, s2 = diag_gaussian_forward(x2, bias2)
        jax.block_until_ready((m2, s2))
        rm2, rs2 = _reference(x2, bias2)
        assert jnp.allclose(m2, rm2, atol=1e-6)
        assert jnp.allclose(s2, rs2, atol=1e-6)

    print("KERNEL_OK")
</pallas_src>

<mosaic_0001>
module attributes {stable_mosaic.version = 11 : i64} {
  func.func @_std_kernel(%arg0: i32, %arg1: memref<2x128xf32, #tpu.memory_space<vmem>>, %arg2: memref<2x128xf32, #tpu.memory_space<vmem>>) attributes {dimension_semantics = [#tpu.dimension_semantics<parallel>], iteration_bounds = array<i64: 1>, scalar_prefetch = 0 : i64, scratch_operands = 0 : i64, tpu.core_type = #tpu.core_type<tc>, window_params = [{pipeline_mode = #tpu.pipeline_mode<synchronous>, transform_indices = @transform_0, window_bounds = array<i64: 2, 128>}, {transform_indices = @transform_1, window_bounds = array<i64: 2, 128>}]} {
    %c0 = arith.constant 0 : index
    %c0_0 = arith.constant 0 : index
    %0 = vector.load %arg1[%c0, %c0_0] : memref<2x128xf32, #tpu.memory_space<vmem>>, vector<2x128xf32>
    %c0_1 = arith.constant 0 : index
    %c0_2 = arith.constant 0 : index
    %1 = vector.load %arg2[%c0_1, %c0_2] : memref<2x128xf32, #tpu.memory_space<vmem>>, vector<2x128xf32>
    tpu.vector_store %arg2[%c0_1, %c0_2], %0 {strides = array<i32>} : memref<2x128xf32, #tpu.memory_space<vmem>>, vector<2x128xf32>,
    return
  }
  func.func @transform_0(%arg0: i32) -> (i32, i32) {
    %c0_i32 = arith.constant 0 : i32
    %c0_i32_0 = arith.constant 0 : i32
    %c0_i32_1 = arith.constant 0 : i32
    return %c0_i32, %c0_i32_0 : i32, i32
  }
  func.func @transform_1(%arg0: i32) -> (i32, i32) {
    %c0_i32 = arith.constant 0 : i32
    %c0_i32_0 = arith.constant 0 : i32
    return %arg0, %c0_i32 : i32, i32
  }
}

</mosaic_0001>

<llo_original>
// kernel: tpu_custom_call.1
$region0: #{tpu_custom_call.1}
  #allocation0 [shape = 'u32[]', space=smem, size = 0x4, offset = 0x4, fixed_abs, tag = 'smem constant byte address 0x4 - core index']
  #allocation1 [shape = 'u32[72,128]{1,0:T(1,128)}', space=vmem, size = 0x9000, scoped, tag = 'internal scratch']
  %s0 = inlined_call_operand.hbm [shape: f32[2,128], index: 0, kind: input, shape index: {}]
  %s1 = inlined_call_operand.hbm [shape: f32[2,128], index: 1, kind: output, shape index: {}]
  %s2 = sld [smem:[#allocation0]]
  $region18: #{tpu_custom_call.1} parent=0
    _
  %s4 = ssub.s32 1, %s2
  %s5 = scalar_select 0, %s4, %s2
  $region1: #{tpu_custom_call.1} parent=0
    #allocation2 [shape = 'u8[1024]{0}', space=vmem, size = 0x400, scoped, tag = 'input window, operand 0, single buffered']
    #allocation3 [shape = 's32[1]{0}', space=sflag, size = 0x4, scoped, tag = 'scoped memory for tpu_custom_call.1']
    #allocation4 [shape = 's32[1]{0}', space=sflag, size = 0x4, scoped, tag = 'scoped memory for tpu_custom_call.1']
    #allocation5 [shape = 'u8[1024]{0}', space=vmem, size = 0x400, scoped, tag = 'output window, operand 0, single buffered']
    %6 = vsyncpa [#allocation3], 0
    %7 = vsyncpa [#allocation4], 0
    // Predicated region
    $region2: #{tpu_custom_call.1} parent=1 // pred_check
      _
    $region3: #{tpu_custom_call.1} parent=1 // pred_check_branch
      %9 = sbr.rel (0) target = $region5
    $region4: #{tpu_custom_call.1} parent=1 // pred_region
      %11 = vsyncadd [#allocation3], 0
      %s13 = sshll.u32 %s0, 4
      %s14 = int_to_ptr.hbm [resolvable:$true] %s13
      %s15 = sshll.u32 [#allocation2], 4
      %s16 = int_to_ptr.vmem [resolvable:$true] %s15
      %18 = dma.hbm_to_vmem [thread:$0]  %s14, 32, %s16, [#allocation3]
    $region5: #{tpu_custom_call.1} parent=1 // pred_fallthru
      _
    // Predicated region
    $region6: #{tpu_custom_call.1} parent=1 // pred_check
      _
    $region7: #{tpu_custom_call.1} parent=1 // pred_check_branch
      %20 = sbr.rel (0) target = $region9
    $region8: #{tpu_custom_call.1} parent=1 // pred_region
      %22 = dma.done [#allocation3], 32
    $region9: #{tpu_custom_call.1} parent=1 // pred_fallthru
      _
    %v23 = vld [vmem:[#allocation2] sm:$0x3]
    %24 = vst [vmem:[#allocation5] sm:$0x3] %v23
    // Predicated region
    $region10: #{tpu_custom_call.1} parent=1 // pred_check
      _
    $region11: #{tpu_custom_call.1} parent=1 // pred_check_branch
      %26 = sbr.rel (0) target = $region13
    $region12: #{tpu_custom_call.1} parent=1 // pred_region
      %28 = vsyncadd [#allocation4], 0
      %s30 = sshll.u32 [#allocation5], 4
      %s31 = int_to_ptr.vmem [resolvable:$true] %s30
      %s32 = sshll.u32 %s1, 4
      %s33 = int_to_ptr.hbm [resolvable:$true] %s32
      %35 = dma.vmem_to_hbm [thread:$0]  %s31, 32, %s33, [#allocation4]
    $region13: #{tpu_custom_call.1} parent=1 // pred_fallthru
      _
    // Predicated region
    $region14: #{tpu_custom_call.1} parent=1 // pred_check
      _
    $region15: #{tpu_custom_call.1} parent=1 // pred_check_branch
      %37 = sbr.rel (0) target = $region17
    $region16: #{tpu_custom_call.1} parent=1 // pred_region
      %39 = dma.done [#allocation4], 32
    $region17: #{tpu_custom_call.1} parent=1 // pred_fallthru
      _
    %40 = vsyncpa [#allocation3], 1
    %41 = vsyncpa [#allocation4], 1

</llo_original>
